<compile_context>
chip_gen: v5e
topology: v5e:2x2
jax: 0.10.0
libtpu: 0.0.40
codegen_flags: <defaults>
</compile_context>

<pallas_src>
import jax
import jax.numpy as jnp
from jax.experimental import pallas as pl
from jax.experimental.pallas import tpu as pltpu


def _round_up(n, m):
    return ((n + m - 1) // m) * m


def cnn_kernel(p_ref, w1_ref, b1_ref, w2_ref, b2_ref, w3_ref, b3_ref, out_ref):
    n_pos, tb, k1 = p_ref.shape            # (64, TB, 48), position-major
    c2p = w2_ref.shape[-1]                 # 32 (padded from 30)

    # ---- conv1 (4x4, stride 4) as ONE batched matmul over all samples & patches ----
    lhs = p_ref[...].reshape(n_pos * tb, k1)                      # free leading-dim merge
    h1 = jnp.dot(lhs, w1_ref[...], preferred_element_type=jnp.float32)   # (64*TB, 16) raw

    # ---- maxpool 3x3/s2 (8x8 -> 3x3) fused with conv2 (3x3 valid -> 1x1) ----
    # bias + ReLU are applied AFTER pooling (exact: per-channel bias is constant over the
    # window and ReLU is monotonic).  conv2 is the single (TB, 144) @ (144, 32) matmul,
    # evaluated as its K-split: 9 accumulated (TB,16)@(16,32) dots on whole-batch slabs.
    acc = jnp.zeros((tb, c2p), jnp.float32)
    for pr in range(3):
        for pc in range(3):
            pooled = None
            for dr in range(3):
                for dc in range(3):
                    idx = (2 * pr + dr) * 8 + (2 * pc + dc)
                    slab = h1[idx * tb:(idx + 1) * tb, :]         # (TB, 16) aligned rows
                    pooled = slab if pooled is None else jnp.maximum(pooled, slab)
            act = jnp.maximum(pooled + b1_ref[...], 0.0)          # conv1 bias + ReLU
            acc = acc + jnp.dot(act, w2_ref[pr, pc, :, :],
                                preferred_element_type=jnp.float32)
    h2 = jnp.maximum(acc + b2_ref[...], 0.0)                      # (TB, 32), cols 30..31 == 0

    # ---- conv3: Conv1d(30 -> 1, kernel 1) == (TB,32) @ (32,1) + bias, then sigmoid ----
    logit = jnp.dot(h2, w3_ref[...], preferred_element_type=jnp.float32) + b3_ref[...]
    out_ref[...] = jax.nn.sigmoid(logit)                          # (TB, 1)


def minimalistic_cnn_forward(x, W1, b1, W2, b2, W3, b3, *,
                             block_b=256, vmem_limit_bytes=32 * 1024 * 1024):
    """x: (B, 3, 32, 32) float32, NCHW.  Returns (B, 1, 1) float32 (matches PyTorch)."""
    B, C, H, W = x.shape
    assert (C, H, W) == (3, 32, 32)
    C1, C1P = 15, 16
    C2, C2P = 30, 32

    # batch tile: multiple of 8, capped by block_b; pad B up to a multiple of it
    tb = min(_round_up(block_b, 8), _round_up(B, 8))
    bpad = _round_up(B, tb)
    n_blocks = bpad // tb

    # --- glue: im2col for conv1 (stride == kernel -> pure reshape/transpose), position-major.
    # (B,3,32,32) -> (B,c,ph,kh,pw,kw) -> (ph,pw,B,c,kh,kw) -> (64, B, 48); feature order
    # (c, kh, kw) matches W1.reshape(15, 48).
    patches = x.reshape(B, 3, 8, 4, 8, 4).transpose(2, 4, 0, 1, 3, 5).reshape(64, B, 48)
    if bpad != B:
        patches = jnp.pad(patches, ((0, 0), (0, bpad - B), (0, 0)))

    # --- glue: weight re-layouts with zero lane-padding (15->16, 30->32) ---
    w1m = jnp.zeros((48, C1P), jnp.float32).at[:, :C1].set(W1.reshape(C1, 48).T)
    b1m = jnp.zeros((1, C1P), jnp.float32).at[:, :C1].set(b1.reshape(1, C1))
    w2m = jnp.zeros((3, 3, C1P, C2P), jnp.float32).at[:, :, :C1, :C2].set(
        W2.transpose(2, 3, 1, 0))                               # (kh, kw, in_c, out_c)
    b2m = jnp.zeros((1, C2P), jnp.float32).at[:, :C2].set(b2.reshape(1, C2))
    w3m = jnp.zeros((C2P, 1), jnp.float32).at[:C2, :].set(W3[:, :, 0].T)
    b3m = b3.reshape(1, 1)

    grid_spec = pltpu.PrefetchScalarGridSpec(
        num_scalar_prefetch=0,
        grid=(n_blocks,),
        in_specs=[
            pl.BlockSpec((64, tb, 48), lambda i: (0, i, 0)),
            pl.BlockSpec((48, C1P), lambda i: (0, 0)),
            pl.BlockSpec((1, C1P), lambda i: (0, 0)),
            pl.BlockSpec((3, 3, C1P, C2P), lambda i: (0, 0, 0, 0)),
            pl.BlockSpec((1, C2P), lambda i: (0, 0)),
            pl.BlockSpec((C2P, 1), lambda i: (0, 0)),
            pl.BlockSpec((1, 1), lambda i: (0, 0)),
        ],
        out_specs=pl.BlockSpec((tb, 1), lambda i: (i, 0)),
    )

    out = pl.pallas_call(
        cnn_kernel,
        out_shape=jax.ShapeDtypeStruct((bpad, 1), jnp.float32),
        grid_spec=grid_spec,
        compiler_params=pltpu.CompilerParams(
            dimension_semantics=("parallel",),
            vmem_limit_bytes=vmem_limit_bytes,
        ),
    )(patches, w1m, b1m, w2m, b2m, w3m, b3m)

    return out[:B].reshape(B, 1, 1)


def reference_forward(x, W1, b1, W2, b2, W3, b3):
    """Pure-JAX reference mirroring the PyTorch forward exactly."""
    dn = ("NCHW", "OIHW", "NCHW")
    y = jax.lax.conv_general_dilated(x, W1, (4, 4), "VALID", dimension_numbers=dn)
    y = jax.nn.relu(y + b1.reshape(1, -1, 1, 1))
    y = jax.lax.reduce_window(y, -jnp.inf, jax.lax.max, (1, 1, 3, 3), (1, 1, 2, 2), "VALID")
    y = jax.lax.conv_general_dilated(y, W2, (1, 1), "VALID", dimension_numbers=dn)
    y = jax.nn.relu(y + b2.reshape(1, -1, 1, 1))
    y = y.reshape(-1, 30, 1)
    y = jnp.einsum("oc,bcl->bol", W3[:, :, 0], y) + b3.reshape(1, 1, 1)
    return jax.nn.sigmoid(y)


if __name__ == "__main__":
    key = jax.random.PRNGKey(0)
    kx, k1, k2, k3, k4, k5, k6 = jax.random.split(key, 7)

    # deterministic synthetic parameters (shapes from the module's __init__)
    W1 = jax.random.normal(k1, (15, 3, 4, 4), jnp.float32) * 0.10   # conv1
    b1 = jax.random.normal(k2, (15,), jnp.float32) * 0.10
    W2 = jax.random.normal(k3, (30, 15, 3, 3), jnp.float32) * 0.05  # conv2
    b2 = jax.random.normal(k4, (30,), jnp.float32) * 0.05
    W3 = jax.random.normal(k5, (1, 30, 1), jnp.float32) * 0.10      # conv3 (Conv1d)
    b3 = jax.random.normal(k6, (1,), jnp.float32) * 0.10

    # small shape consistent with the module: B=2, NCHW (3, 32, 32)
    B = 2
    x = jax.random.normal(kx, (B, 3, 32, 32), jnp.float32)
    out = jax.block_until_ready(minimalistic_cnn_forward(x, W1, b1, W2, b2, W3, b3))
    ref = reference_forward(x, W1, b1, W2, b2, W3, b3)
    assert out.shape == (B, 1, 1)
    # f32-via-MXU accumulation-order tolerance
    assert jnp.allclose(out, ref, atol=1e-4, rtol=1e-4), (out, ref)

    # second check: exercises the multi-block grid and the batch-tail padding path
    B2 = 37
    x2 = jax.random.normal(kx, (B2, 3, 32, 32), jnp.float32)
    out2 = jax.block_until_ready(
        minimalistic_cnn_forward(x2, W1, b1, W2, b2, W3, b3, block_b=16))
    ref2 = reference_forward(x2, W1, b1, W2, b2, W3, b3)
    assert out2.shape == (B2, 1, 1)
    assert jnp.allclose(out2, ref2, atol=1e-4, rtol=1e-4), (out2, ref2)

    print("KERNEL_OK")
</pallas_src>

<mosaic_0001>
module attributes {stable_mosaic.version = 11 : i64} {
  func.func @cnn_kernel(%arg0: i32, %arg1: memref<64x8x48xf32, #tpu.memory_space<vmem>>, %arg2: memref<48x16xf32, #tpu.memory_space<vmem>>, %arg3: memref<1x16xf32, #tpu.memory_space<vmem>>, %arg4: memref<3x3x16x32xf32, #tpu.memory_space<vmem>>, %arg5: memref<1x32xf32, #tpu.memory_space<vmem>>, %arg6: memref<32x1xf32, #tpu.memory_space<vmem>>, %arg7: memref<1x1xf32, #tpu.memory_space<vmem>>, %arg8: memref<8x1xf32, #tpu.memory_space<vmem>>) attributes {dimension_semantics = [#tpu.dimension_semantics<parallel>], iteration_bounds = array<i64: 1>, scalar_prefetch = 0 : i64, scratch_operands = 0 : i64, tpu.core_type = #tpu.core_type<tc>, window_params = [{transform_indices = @transform_0, window_bounds = array<i64: 64, 8, 48>}, {pipeline_mode = #tpu.pipeline_mode<synchronous>, transform_indices = @transform_1, window_bounds = array<i64: 48, 16>}, {pipeline_mode = #tpu.pipeline_mode<synchronous>, transform_indices = @transform_2, window_bounds = array<i64: 1, 16>}, {pipeline_mode = #tpu.pipeline_mode<synchronous>, transform_indices = @transform_3, window_bounds = array<i64: 3, 3, 16, 32>}, {pipeline_mode = #tpu.pipeline_mode<synchronous>, transform_indices = @transform_4, window_bounds = array<i64: 1, 32>}, {pipeline_mode = #tpu.pipeline_mode<synchronous>, transform_indices = @transform_5, window_bounds = array<i64: 32, 1>}, {pipeline_mode = #tpu.pipeline_mode<synchronous>, transform_indices = @transform_6, window_bounds = array<i64: 1, 1>}, {transform_indices = @transform_7, window_bounds = array<i64: 8, 1>}]} {
    %c0 = arith.constant 0 : index
    %c0_0 = arith.constant 0 : index
    %c0_1 = arith.constant 0 : index
    %0 = vector.load %arg1[%c0, %c0_0, %c0_1] : memref<64x8x48xf32, #tpu.memory_space<vmem>>, vector<64x8x48xf32>
    %1 = vector.shape_cast %0 : vector<64x8x48xf32> to vector<512x48xf32>
    %c0_2 = arith.constant 0 : index
    %c0_3 = arith.constant 0 : index
    %2 = vector.load %arg2[%c0_2, %c0_3] : memref<48x16xf32, #tpu.memory_space<vmem>>, vector<48x16xf32>
    %cst = arith.constant dense<0.000000e+00> : vector<512x16xf32>
    %3 = tpu.matmul %1, %2, %cst {dimension_numbers = #tpu.dot_dimension_numbers<[1], [0], [0], [1], [0, 0, 1, 1], [], []>} : vector<512x48xf32>, vector<48x16xf32>, vector<512x16xf32> -> vector<512x16xf32>
    %cst_4 = arith.constant 0.000000e+00 : f32
    %4 = vector.broadcast %cst_4 : f32 to vector<8x32xf32>
    %5 = vector.extract_strided_slice %3 {offsets = [0, 0], sizes = [8, 16], strides = [1, 1]} : vector<512x16xf32> to vector<8x16xf32>
    %6 = vector.extract_strided_slice %3 {offsets = [8, 0], sizes = [8, 16], strides = [1, 1]} : vector<512x16xf32> to vector<8x16xf32>
    %7 = arith.maximumf %5, %6 : vector<8x16xf32>
    %8 = vector.extract_strided_slice %3 {offsets = [16, 0], sizes = [8, 16], strides = [1, 1]} : vector<512x16xf32> to vector<8x16xf32>
    %9 = arith.maximumf %7, %8 : vector<8x16xf32>
    %10 = vector.extract_strided_slice %3 {offsets = [64, 0], sizes = [8, 16], strides = [1, 1]} : vector<512x16xf32> to vector<8x16xf32>
    %11 = arith.maximumf %9, %10 : vector<8x16xf32>
    %12 = vector.extract_strided_slice %3 {offsets = [72, 0], sizes = [8, 16], strides = [1, 1]} : vector<512x16xf32> to vector<8x16xf32>
    %13 = arith.maximumf %11, %12 : vector<8x16xf32>
    %14 = vector.extract_strided_slice %3 {offsets = [80, 0], sizes = [8, 16], strides = [1, 1]} : vector<512x16xf32> to vector<8x16xf32>
    %15 = arith.maximumf %13, %14 : vector<8x16xf32>
    %16 = vector.extract_strided_slice %3 {offsets = [128, 0], sizes = [8, 16], strides = [1, 1]} : vector<512x16xf32> to vector<8x16xf32>
    %17 = arith.maximumf %15, %16 : vector<8x16xf32>
    %18 = vector.extract_strided_slice %3 {offsets = [136, 0], sizes = [8, 16], strides = [1, 1]} : vector<512x16xf32> to vector<8x16xf32>
    %19 = arith.maximumf %17, %18 : vector<8x16xf32>
    %20 = vector.extract_strided_slice %3 {offsets = [144, 0], sizes = [8, 16], strides = [1, 1]} : vector<512x16xf32> to vector<8x16xf32>
    %21 = arith.maximumf %19, %20 : vector<8x16xf32>
    %c0_5 = arith.constant 0 : index
    %c0_6 = arith.constant 0 : index
    %22 = vector.load %arg3[%c0_5, %c0_6] : memref<1x16xf32, #tpu.memory_space<vmem>>, vector<1x16xf32>
    %23 = vector.broadcast %22 : vector<1x16xf32> to vector<8x16xf32>
    %24 = arith.addf %21, %23 : vector<8x16xf32>
    %cst_7 = arith.constant 0.000000e+00 : f32
    %25 = vector.broadcast %cst_7 : f32 to vector<8x16xf32>
    %26 = arith.maximumf %24, %25 : vector<8x16xf32>
    %c0_8 = arith.constant 0 : index
    %c0_9 = arith.constant 0 : index
    %c0_10 = arith.constant 0 : index
    %c0_11 = arith.constant 0 : index
    %27 = vector.load %arg4[%c0_8, %c0_9, %c0_10, %c0_11] : memref<3x3x16x32xf32, #tpu.memory_space<vmem>>, vector<1x1x16x32xf32>
    %28 = vector.shape_cast %27 : vector<1x1x16x32xf32> to vector<16x32xf32>
    %cst_12 = arith.constant dense<0.000000e+00> : vector<8x32xf32>
    %29 = tpu.matmul %26, %28, %cst_12 {dimension_numbers = #tpu.dot_dimension_numbers<[1], [0], [0], [1], [0, 0, 1, 1], [], []>} : vector<8x16xf32>, vector<16x32xf32>, vector<8x32xf32> -> vector<8x32xf32>
    %30 = arith.addf %4, %29 : vector<8x32xf32>
    %31 = vector.extract_strided_slice %3 {offsets = [16, 0], sizes = [8, 16], strides = [1, 1]} : vector<512x16xf32> to vector<8x16xf32>
    %32 = vector.extract_strided_slice %3 {offsets = [24, 0], sizes = [8, 16], strides = [1, 1]} : vector<512x16xf32> to vector<8x16xf32>
    %33 = arith.maximumf %31, %32 : vector<8x16xf32>
    %34 = vector.extract_strided_slice %3 {offsets = [32, 0], sizes = [8, 16], strides = [1, 1]} : vector<512x16xf32> to vector<8x16xf32>
    %35 = arith.maximumf %33, %34 : vector<8x16xf32>
    %36 = vector.extract_strided_slice %3 {offsets = [80, 0], sizes = [8, 16], strides = [1, 1]} : vector<512x16xf32> to vector<8x16xf32>
    %37 = arith.maximumf %35, %36 : vector<8x16xf32>
    %38 = vector.extract_strided_slice %3 {offsets = [88, 0], sizes = [8, 16], strides = [1, 1]} : vector<512x16xf32> to vector<8x16xf32>
    %39 = arith.maximumf %37, %38 : vector<8x16xf32>
    %40 = vector.extract_strided_slice %3 {offsets = [96, 0], sizes = [8, 16], strides = [1, 1]} : vector<512x16xf32> to vector<8x16xf32>
    %41 = arith.maximumf %39, %40 : vector<8x16xf32>
    %42 = vector.extract_strided_slice %3 {offsets = [144, 0], sizes = [8, 16], strides = [1, 1]} : vector<512x16xf32> to vector<8x16xf32>
    %43 = arith.maximumf %41, %42 : vector<8x16xf32>
    %44 = vector.extract_strided_slice %3 {offsets = [152, 0], sizes = [8, 16], strides = [1, 1]} : vector<512x16xf32> to vector<8x16xf32>
    %45 = arith.maximumf %43, %44 : vector<8x16xf32>
    %46 = vector.extract_strided_slice %3 {offsets = [160, 0], sizes = [8, 16], strides = [1, 1]} : vector<512x16xf32> to vector<8x16xf32>
    %47 = arith.maximumf %45, %46 : vector<8x16xf32>
    %c0_13 = arith.constant 0 : index
    %c0_14 = arith.constant 0 : index
    %48 = vector.load %arg3[%c0_13, %c0_14] : memref<1x16xf32, #tpu.memory_space<vmem>>, vector<1x16xf32>
    %49 = vector.broadcast %48 : vector<1x16xf32> to vector<8x16xf32>
    %50 = arith.addf %47, %49 : vector<8x16xf32>
    %cst_15 = arith.constant 0.000000e+00 : f32
    %51 = vector.broadcast %cst_15 : f32 to vector<8x16xf32>
    %52 = arith.maximumf %50, %51 : vector<8x16xf32>
    %c0_16 = arith.constant 0 : index
    %c1 = arith.constant 1 : index
    %c0_17 = arith.constant 0 : index
    %c0_18 = arith.constant 0 : index
    %53 = vector.load %arg4[%c0_16, %c1, %c0_17, %c0_18] : memref<3x3x16x32xf32, #tpu.memory_space<vmem>>, vector<1x1x16x32xf32>
    %54 = vector.shape_cast %53 : vector<1x1x16x32xf32> to vector<16x32xf32>
    %cst_19 = arith.constant dense<0.000000e+00> : vector<8x32xf32>
    %55 = tpu.matmul %52, %54, %cst_19 {dimension_numbers = #tpu.dot_dimension_numbers<[1], [0], [0], [1], [0, 0, 1, 1], [], []>} : vector<8x16xf32>, vector<16x32xf32>, vector<8x32xf32> -> vector<8x32xf32>
    %56 = arith.addf %30, %55 : vector<8x32xf32>
    %57 = vector.extract_strided_slice %3 {offsets = [32, 0], sizes = [8, 16], strides = [1, 1]} : vector<512x16xf32> to vector<8x16xf32>
    %58 = vector.extract_strided_slice %3 {offsets = [40, 0], sizes = [8, 16], strides = [1, 1]} : vector<512x16xf32> to vector<8x16xf32>
    %59 = arith.maximumf %57, %58 : vector<8x16xf32>
    %60 = vector.extract_strided_slice %3 {offsets = [48, 0], sizes = [8, 16], strides = [1, 1]} : vector<512x16xf32> to vector<8x16xf32>
    %61 = arith.maximumf %59, %60 : vector<8x16xf32>
    %62 = vector.extract_strided_slice %3 {offsets = [96, 0], sizes = [8, 16], strides = [1, 1]} : vector<512x16xf32> to vector<8x16xf32>
    %63 = arith.maximumf %61, %62 : vector<8x16xf32>
    %64 = vector.extract_strided_slice %3 {offsets = [104, 0], sizes = [8, 16], strides = [1, 1]} : vector<512x16xf32> to vector<8x16xf32>
    %65 = arith.maximumf %63, %64 : vector<8x16xf32>
    %66 = vector.extract_strided_slice %3 {offsets = [112, 0], sizes = [8, 16], strides = [1, 1]} : vector<512x16xf32> to vector<8x16xf32>
    %67 = arith.maximumf %65, %66 : vector<8x16xf32>
    %68 = vector.extract_strided_slice %3 {offsets = [160, 0], sizes = [8, 16], strides = [1, 1]} : vector<512x16xf32> to vector<8x16xf32>
    %69 = arith.maximumf %67, %68 : vector<8x16xf32>
    %70 = vector.extract_strided_slice %3 {offsets = [168, 0], sizes = [8, 16], strides = [1, 1]} : vector<512x16xf32> to vector<8x16xf32>
    %71 = arith.maximumf %69, %70 : vector<8x16xf32>
    %72 = vector.extract_strided_slice %3 {offsets = [176, 0], sizes = [8, 16], strides = [1, 1]} : vector<512x16xf32> to vector<8x16xf32>
    %73 = arith.maximumf %71, %72 : vector<8x16xf32>
    %c0_20 = arith.constant 0 : index
    %c0_21 = arith.constant 0 : index
    %74 = vector.load %arg3[%c0_20, %c0_21] : memref<1x16xf32, #tpu.memory_space<vmem>>, vector<1x16xf32>
    %75 = vector.broadcast %74 : vector<1x16xf32> to vector<8x16xf32>
    %76 = arith.addf %73, %75 : vector<8x16xf32>
    %cst_22 = arith.constant 0.000000e+00 : f32
    %77 = vector.broadcast %cst_22 : f32 to vector<8x16xf32>
    %78 = arith.maximumf %76, %77 : vector<8x16xf32>
    %c0_23 = arith.constant 0 : index
    %c2 = arith.constant 2 : index
    %c0_24 = arith.constant 0 : index
    %c0_25 = arith.constant 0 : index
    %79 = vector.load %arg4[%c0_23, %c2, %c0_24, %c0_25] : memref<3x3x16x32xf32, #tpu.memory_space<vmem>>, vector<1x1x16x32xf32>
    %80 = vector.shape_cast %79 : vector<1x1x16x32xf32> to vector<16x32xf32>
    %cst_26 = arith.constant dense<0.000000e+00> : vector<8x32xf32>
    %81 = tpu.matmul %78, %80, %cst_26 {dimension_numbers = #tpu.dot_dimension_numbers<[1], [0], [0], [1], [0, 0, 1, 1], [], []>} : vector<8x16xf32>, vector<16x32xf32>, vector<8x32xf32> -> vector<8x32xf32>
    %82 = arith.addf %56, %81 : vector<8x32xf32>
    %83 = vector.extract_strided_slice %3 {offsets = [128, 0], sizes = [8, 16], strides = [1, 1]} : vector<512x16xf32> to vector<8x16xf32>
    %84 = vector.extract_strided_slice %3 {offsets = [136, 0], sizes = [8, 16], strides = [1, 1]} : vector<512x16xf32> to vector<8x16xf32>
    %85 = arith.maximumf %83, %84 : vector<8x16xf32>
    %86 = vector.extract_strided_slice %3 {offsets = [144, 0], sizes = [8, 16], strides = [1, 1]} : vector<512x16xf32> to vector<8x16xf32>
    %87 = arith.maximumf %85, %86 : vector<8x16xf32>
    %88 = vector.extract_strided_slice %3 {offsets = [192, 0], sizes = [8, 16], strides = [1, 1]} : vector<512x16xf32> to vector<8x16xf32>
    %89 = arith.maximumf %87, %88 : vector<8x16xf32>
    %90 = vector.extract_strided_slice %3 {offsets = [200, 0], sizes = [8, 16], strides = [1, 1]} : vector<512x16xf32> to vector<8x16xf32>
    %91 = arith.maximumf %89, %90 : vector<8x16xf32>
    %92 = vector.extract_strided_slice %3 {offsets = [208, 0], sizes = [8, 16], strides = [1, 1]} : vector<512x16xf32> to vector<8x16xf32>
    %93 = arith.maximumf %91, %92 : vector<8x16xf32>
    %94 = vector.extract_strided_slice %3 {offsets = [256, 0], sizes = [8, 16], strides = [1, 1]} : vector<512x16xf32> to vector<8x16xf32>
    %95 = arith.maximumf %93, %94 : vector<8x16xf32>
    %96 = vector.extract_strided_slice %3 {offsets = [264, 0], sizes = [8, 16], strides = [1, 1]} : vector<512x16xf32> to vector<8x16xf32>
    %97 = arith.maximumf %95, %96 : vector<8x16xf32>
    %98 = vector.extract_strided_slice %3 {offsets = [272, 0], sizes = [8, 16], strides = [1, 1]} : vector<512x16xf32> to vector<8x16xf32>
    %99 = arith.maximumf %97, %98 : vector<8x16xf32>
    %c0_27 = arith.constant 0 : index
    %c0_28 = arith.constant 0 : index
    %100 = vector.load %arg3[%c0_27, %c0_28] : memref<1x16xf32, #tpu.memory_space<vmem>>, vector<1x16xf32>
    %101 = vector.broadcast %100 : vector<1x16xf32> to vector<8x16xf32>
    %102 = arith.addf %99, %101 : vector<8x16xf32>
    %cst_29 = arith.constant 0.000000e+00 : f32
    %103 = vector.broadcast %cst_29 : f32 to vector<8x16xf32>
    %104 = arith.maximumf %102, %103 : vector<8x16xf32>
    %c1_30 = arith.constant 1 : index
    %c0_31 = arith.constant 0 : index
    %c0_32 = arith.constant 0 : index
    %c0_33 = arith.constant 0 : index
    %105 = vector.load %arg4[%c1_30, %c0_31, %c0_32, %c0_33] : memref<3x3x16x32xf32, #tpu.memory_space<vmem>>, vector<1x1x16x32xf32>
    %106 = vector.shape_cast %105 : vector<1x1x16x32xf32> to vector<16x32xf32>
    %cst_34 = arith.constant dense<0.000000e+00> : vector<8x32xf32>
    %107 = tpu.matmul %104, %106, %cst_34 {dimension_numbers = #tpu.dot_dimension_numbers<[1], [0], [0], [1], [0, 0, 1, 1], [], []>} : vector<8x16xf32>, vector<16x32xf32>, vector<8x32xf32> -> vector<8x32xf32>
    %108 = arith.addf %82, %107 : vector<8x32xf32>
    %109 = vector.extract_strided_slice %3 {offsets = [144, 0], sizes = [8, 16], strides = [1, 1]} : vector<512x16xf32> to vector<8x16xf32>
    %110 = vector.extract_strided_slice %3 {offsets = [152, 0], sizes = [8, 16], strides = [1, 1]} : vector<512x16xf32> to vector<8x16xf32>
    %111 = arith.maximumf %109, %110 : vector<8x16xf32>
    %112 = vector.extract_strided_slice %3 {offsets = [160, 0], sizes = [8, 16], strides = [1, 1]} : vector<512x16xf32> to vector<8x16xf32>
    %113 = arith.maximumf %111, %112 : vector<8x16xf32>
    %114 = vector.extract_strided_slice %3 {offsets = [208, 0], sizes = [8, 16], strides = [1, 1]} : vector<512x16xf32> to vector<8x16xf32>
    %115 = arith.maximumf %113, %114 : vector<8x16xf32>
    %116 = vector.extract_strided_slice %3 {offsets = [216, 0], sizes = [8, 16], strides = [1, 1]} : vector<512x16xf32> to vector<8x16xf32>
    %117 = arith.maximumf %115, %116 : vector<8x16xf32>
    %118 = vector.extract_strided_slice %3 {offsets = [224, 0], sizes = [8, 16], strides = [1, 1]} : vector<512x16xf32> to vector<8x16xf32>
    %119 = arith.maximumf %117, %118 : vector<8x16xf32>
    %120 = vector.extract_strided_slice %3 {offsets = [272, 0], sizes = [8, 16], strides = [1, 1]} : vector<512x16xf32> to vector<8x16xf32>
    %121 = arith.maximumf %119, %120 : vector<8x16xf32>
    %122 = vector.extract_strided_slice %3 {offsets = [280, 0], sizes = [8, 16], strides = [1, 1]} : vector<512x16xf32> to vector<8x16xf32>
    %123 = arith.maximumf %121, %122 : vector<8x16xf32>
    %124 = vector.extract_strided_slice %3 {offsets = [288, 0], sizes = [8, 16], strides = [1, 1]} : vector<512x16xf32> to vector<8x16xf32>
    %125 = arith.maximumf %123, %124 : vector<8x16xf32>
    %c0_35 = arith.constant 0 : index
    %c0_36 = arith.constant 0 : index
    %126 = vector.load %arg3[%c0_35, %c0_36] : memref<1x16xf32, #tpu.memory_space<vmem>>, vector<1x16xf32>
    %127 = vector.broadcast %126 : vector<1x16xf32> to vector<8x16xf32>
    %128 = arith.addf %125, %127 : vector<8x16xf32>
    %cst_37 = arith.constant 0.000000e+00 : f32
    %129 = vector.broadcast %cst_37 : f32 to vector<8x16xf32>
    %130 = arith.maximumf %128, %129 : vector<8x16xf32>
    %c1_38 = arith.constant 1 : index
    %c1_39 = arith.constant 1 : index
    %c0_40 = arith.constant 0 : index
    %c0_41 = arith.constant 0 : index
    %131 = vector.load %arg4[%c1_38, %c1_39, %c0_40, %c0_41] : memref<3x3x16x32xf32, #tpu.memory_space<vmem>>, vector<1x1x16x32xf32>
    %132 = vector.shape_cast %131 : vector<1x1x16x32xf32> to vector<16x32xf32>
    %cst_42 = arith.constant dense<0.000000e+00> : vector<8x32xf32>
    %133 = tpu.matmul %130, %132, %cst_42 {dimension_numbers = #tpu.dot_dimension_numbers<[1], [0], [0], [1], [0, 0, 1, 1], [], []>} : vector<8x16xf32>, vector<16x32xf32>, vector<8x32xf32> -> vector<8x32xf32>
    %134 = arith.addf %108, %133 : vector<8x32xf32>
    %135 = vector.extract_strided_slice %3 {offsets = [160, 0], sizes = [8, 16], strides = [1, 1]} : vector<512x16xf32> to vector<8x16xf32>
    %136 = vector.extract_strided_slice %3 {offsets = [168, 0], sizes = [8, 16], strides = [1, 1]} : vector<512x16xf32> to vector<8x16xf32>
    %137 = arith.maximumf %135, %136 : vector<8x16xf32>
    %138 = vector.extract_strided_slice %3 {offsets = [176, 0], sizes = [8, 16], strides = [1, 1]} : vector<512x16xf32> to vector<8x16xf32>
    %139 = arith.maximumf %137, %138 : vector<8x16xf32>
    %140 = vector.extract_strided_slice %3 {offsets = [224, 0], sizes = [8, 16], strides = [1, 1]} : vector<512x16xf32> to vector<8x16xf32>
    %141 = arith.maximumf %139, %140 : vector<8x16xf32>
    %142 = vector.extract_strided_slice %3 {offsets = [232, 0], sizes = [8, 16], strides = [1, 1]} : vector<512x16xf32> to vector<8x16xf32>
    %143 = arith.maximumf %141, %142 : vector<8x16xf32>
    %144 = vector.extract_strided_slice %3 {offsets = [240, 0], sizes = [8, 16], strides = [1, 1]} : vector<512x16xf32> to vector<8x16xf32>
    %145 = arith.maximumf %143, %144 : vector<8x16xf32>
    %146 = vector.extract_strided_slice %3 {offsets = [288, 0], sizes = [8, 16], strides = [1, 1]} : vector<512x16xf32> to vector<8x16xf32>
    %147 = arith.maximumf %145, %146 : vector<8x16xf32>
    %148 = vector.extract_strided_slice %3 {offsets = [296, 0], sizes = [8, 16], strides = [1, 1]} : vector<512x16xf32> to vector<8x16xf32>
    %149 = arith.maximumf %147, %148 : vector<8x16xf32>
    %150 = vector.extract_strided_slice %3 {offsets = [304, 0], sizes = [8, 16], strides = [1, 1]} : vector<512x16xf32> to vector<8x16xf32>
    %151 = arith.maximumf %149, %150 : vector<8x16xf32>
    %c0_43 = arith.constant 0 : index
    %c0_44 = arith.constant 0 : index
    %152 = vector.load %arg3[%c0_43, %c0_44] : memref<1x16xf32, #tpu.memory_space<vmem>>, vector<1x16xf32>
    %153 = vector.broadcast %152 : vector<1x16xf32> to vector<8x16xf32>
    %154 = arith.addf %151, %153 : vector<8x16xf32>
    %cst_45 = arith.constant 0.000000e+00 : f32
    %155 = vector.broadcast %cst_45 : f32 to vector<8x16xf32>
    %156 = arith.maximumf %154, %155 : vector<8x16xf32>
    %c1_46 = arith.constant 1 : index
    %c2_47 = arith.constant 2 : index
    %c0_48 = arith.constant 0 : index
    %c0_49 = arith.constant 0 : index
    %157 = vector.load %arg4[%c1_46, %c2_47, %c0_48, %c0_49] : memref<3x3x16x32xf32, #tpu.memory_space<vmem>>, vector<1x1x16x32xf32>
    %158 = vector.shape_cast %157 : vector<1x1x16x32xf32> to vector<16x32xf32>
    %cst_50 = arith.constant dense<0.000000e+00> : vector<8x32xf32>
    %159 = tpu.matmul %156, %158, %cst_50 {dimension_numbers = #tpu.dot_dimension_numbers<[1], [0], [0], [1], [0, 0, 1, 1], [], []>} : vector<8x16xf32>, vector<16x32xf32>, vector<8x32xf32> -> vector<8x32xf32>
    %160 = arith.addf %134, %159 : vector<8x32xf32>
    %161 = vector.extract_strided_slice %3 {offsets = [256, 0], sizes = [8, 16], strides = [1, 1]} : vector<512x16xf32> to vector<8x16xf32>
    %162 = vector.extract_strided_slice %3 {offsets = [264, 0], sizes = [8, 16], strides = [1, 1]} : vector<512x16xf32> to vector<8x16xf32>
    %163 = arith.maximumf %161, %162 : vector<8x16xf32>
    %164 = vector.extract_strided_slice %3 {offsets = [272, 0], sizes = [8, 16], strides = [1, 1]} : vector<512x16xf32> to vector<8x16xf32>
    %165 = arith.maximumf %163, %164 : vector<8x16xf32>
    %166 = vector.extract_strided_slice %3 {offsets = [320, 0], sizes = [8, 16], strides = [1, 1]} : vector<512x16xf32> to vector<8x16xf32>
    %167 = arith.maximumf %165, %166 : vector<8x16xf32>
    %168 = vector.extract_strided_slice %3 {offsets = [328, 0], sizes = [8, 16], strides = [1, 1]} : vector<512x16xf32> to vector<8x16xf32>
    %169 = arith.maximumf %167, %168 : vector<8x16xf32>
    %170 = vector.extract_strided_slice %3 {offsets = [336, 0], sizes = [8, 16], strides = [1, 1]} : vector<512x16xf32> to vector<8x16xf32>
    %171 = arith.maximumf %169, %170 : vector<8x16xf32>
    %172 = vector.extract_strided_slice %3 {offsets = [384, 0], sizes = [8, 16], strides = [1, 1]} : vector<512x16xf32> to vector<8x16xf32>
    %173 = arith.maximumf %171, %172 : vector<8x16xf32>
    %174 = vector.extract_strided_slice %3 {offsets = [392, 0], sizes = [8, 16], strides = [1, 1]} : vector<512x16xf32> to vector<8x16xf32>
    %175 = arith.maximumf %173, %174 : vector<8x16xf32>
    %176 = vector.extract_strided_slice %3 {offsets = [400, 0], sizes = [8, 16], strides = [1, 1]} : vector<512x16xf32> to vector<8x16xf32>
    %177 = arith.maximumf %175, %176 : vector<8x16xf32>
    %c0_51 = arith.constant 0 : index
    %c0_52 = arith.constant 0 : index
    %178 = vector.load %arg3[%c0_51, %c0_52] : memref<1x16xf32, #tpu.memory_space<vmem>>, vector<1x16xf32>
    %179 = vector.broadcast %178 : vector<1x16xf32> to vector<8x16xf32>
    %180 = arith.addf %177, %179 : vector<8x16xf32>
    %cst_53 = arith.constant 0.000000e+00 : f32
    %181 = vector.broadcast %cst_53 : f32 to vector<8x16xf32>
    %182 = arith.maximumf %180, %181 : vector<8x16xf32>
    %c2_54 = arith.constant 2 : index
    %c0_55 = arith.constant 0 : index
    %c0_56 = arith.constant 0 : index
    %c0_57 = arith.constant 0 : index
    %183 = vector.load %arg4[%c2_54, %c0_55, %c0_56, %c0_57] : memref<3x3x16x32xf32, #tpu.memory_space<vmem>>, vector<1x1x16x32xf32>
    %184 = vector.shape_cast %183 : vector<1x1x16x32xf32> to vector<16x32xf32>
    %cst_58 = arith.constant dense<0.000000e+00> : vector<8x32xf32>
    %185 = tpu.matmul %182, %184, %cst_58 {dimension_numbers = #tpu.dot_dimension_numbers<[1], [0], [0], [1], [0, 0, 1, 1], [], []>} : vector<8x16xf32>, vector<16x32xf32>, vector<8x32xf32> -> vector<8x32xf32>
    %186 = arith.addf %160, %185 : vector<8x32xf32>
    %187 = vector.extract_strided_slice %3 {offsets = [272, 0], sizes = [8, 16], strides = [1, 1]} : vector<512x16xf32> to vector<8x16xf32>
    %188 = vector.extract_strided_slice %3 {offsets = [280, 0], sizes = [8, 16], strides = [1, 1]} : vector<512x16xf32> to vector<8x16xf32>
    %189 = arith.maximumf %187, %188 : vector<8x16xf32>
    %190 = vector.extract_strided_slice %3 {offsets = [288, 0], sizes = [8, 16], strides = [1, 1]} : vector<512x16xf32> to vector<8x16xf32>
    %191 = arith.maximumf %189, %190 : vector<8x16xf32>
    %192 = vector.extract_strided_slice %3 {offsets = [336, 0], sizes = [8, 16], strides = [1, 1]} : vector<512x16xf32> to vector<8x16xf32>
    %193 = arith.maximumf %191, %192 : vector<8x16xf32>
    %194 = vector.extract_strided_slice %3 {offsets = [344, 0], sizes = [8, 16], strides = [1, 1]} : vector<512x16xf32> to vector<8x16xf32>
    %195 = arith.maximumf %193, %194 : vector<8x16xf32>
    %196 = vector.extract_strided_slice %3 {offsets = [352, 0], sizes = [8, 16], strides = [1, 1]} : vector<512x16xf32> to vector<8x16xf32>
    %197 = arith.maximumf %195, %196 : vector<8x16xf32>
    %198 = vector.extract_strided_slice %3 {offsets = [400, 0], sizes = [8, 16], strides = [1, 1]} : vector<512x16xf32> to vector<8x16xf32>
    %199 = arith.maximumf %197, %198 : vector<8x16xf32>
    %200 = vector.extract_strided_slice %3 {offsets = [408, 0], sizes = [8, 16], strides = [1, 1]} : vector<512x16xf32> to vector<8x16xf32>
    %201 = arith.maximumf %199, %200 : vector<8x16xf32>
    %202 = vector.extract_strided_slice %3 {offsets = [416, 0], sizes = [8, 16], strides = [1, 1]} : vector<512x16xf32> to vector<8x16xf32>
    %203 = arith.maximumf %201, %202 : vector<8x16xf32>
    %c0_59 = arith.constant 0 : index
    %c0_60 = arith.constant 0 : index
    %204 = vector.load %arg3[%c0_59, %c0_60] : memref<1x16xf32, #tpu.memory_space<vmem>>, vector<1x16xf32>
    %205 = vector.broadcast %204 : vector<1x16xf32> to vector<8x16xf32>
    %206 = arith.addf %203, %205 : vector<8x16xf32>
    %cst_61 = arith.constant 0.000000e+00 : f32
    %207 = vector.broadcast %cst_61 : f32 to vector<8x16xf32>
    %208 = arith.maximumf %206, %207 : vector<8x16xf32>
    %c2_62 = arith.constant 2 : index
    %c1_63 = arith.constant 1 : index
    %c0_64 = arith.constant 0 : index
    %c0_65 = arith.constant 0 : index
    %209 = vector.load %arg4[%c2_62, %c1_63, %c0_64, %c0_65] : memref<3x3x16x32xf32, #tpu.memory_space<vmem>>, vector<1x1x16x32xf32>
    %210 = vector.shape_cast %209 : vector<1x1x16x32xf32> to vector<16x32xf32>
    %cst_66 = arith.constant dense<0.000000e+00> : vector<8x32xf32>
    %211 = tpu.matmul %208, %210, %cst_66 {dimension_numbers = #tpu.dot_dimension_numbers<[1], [0], [0], [1], [0, 0, 1, 1], [], []>} : vector<8x16xf32>, vector<16x32xf32>, vector<8x32xf32> -> vector<8x32xf32>
    %212 = arith.addf %186, %211 : vector<8x32xf32>
    %213 = vector.extract_strided_slice %3 {offsets = [288, 0], sizes = [8, 16], strides = [1, 1]} : vector<512x16xf32> to vector<8x16xf32>
    %214 = vector.extract_strided_slice %3 {offsets = [296, 0], sizes = [8, 16], strides = [1, 1]} : vector<512x16xf32> to vector<8x16xf32>
    %215 = arith.maximumf %213, %214 : vector<8x16xf32>
    %216 = vector.extract_strided_slice %3 {offsets = [304, 0], sizes = [8, 16], strides = [1, 1]} : vector<512x16xf32> to vector<8x16xf32>
    %217 = arith.maximumf %215, %216 : vector<8x16xf32>
    %218 = vector.extract_strided_slice %3 {offsets = [352, 0], sizes = [8, 16], strides = [1, 1]} : vector<512x16xf32> to vector<8x16xf32>
    %219 = arith.maximumf %217, %218 : vector<8x16xf32>
    %220 = vector.extract_strided_slice %3 {offsets = [360, 0], sizes = [8, 16], strides = [1, 1]} : vector<512x16xf32> to vector<8x16xf32>
    %221 = arith.maximumf %219, %220 : vector<8x16xf32>
    %222 = vector.extract_strided_slice %3 {offsets = [368, 0], sizes = [8, 16], strides = [1, 1]} : vector<512x16xf32> to vector<8x16xf32>
    %223 = arith.maximumf %221, %222 : vector<8x16xf32>
    %224 = vector.extract_strided_slice %3 {offsets = [416, 0], sizes = [8, 16], strides = [1, 1]} : vector<512x16xf32> to vector<8x16xf32>
    %225 = arith.maximumf %223, %224 : vector<8x16xf32>
    %226 = vector.extract_strided_slice %3 {offsets = [424, 0], sizes = [8, 16], strides = [1, 1]} : vector<512x16xf32> to vector<8x16xf32>
    %227 = arith.maximumf %225, %226 : vector<8x16xf32>
    %228 = vector.extract_strided_slice %3 {offsets = [432, 0], sizes = [8, 16], strides = [1, 1]} : vector<512x16xf32> to vector<8x16xf32>
    %229 = arith.maximumf %227, %228 : vector<8x16xf32>
    %c0_67 = arith.constant 0 : index
    %c0_68 = arith.constant 0 : index
    %230 = vector.load %arg3[%c0_67, %c0_68] : memref<1x16xf32, #tpu.memory_space<vmem>>, vector<1x16xf32>
    %231 = vector.broadcast %230 : vector<1x16xf32> to vector<8x16xf32>
    %232 = arith.addf %229, %231 : vector<8x16xf32>
    %cst_69 = arith.constant 0.000000e+00 : f32
    %233 = vector.broadcast %cst_69 : f32 to vector<8x16xf32>
    %234 = arith.maximumf %232, %233 : vector<8x16xf32>
    %c2_70 = arith.constant 2 : index
    %c2_71 = arith.constant 2 : index
    %c0_72 = arith.constant 0 : index
    %c0_73 = arith.constant 0 : index
    %235 = vector.load %arg4[%c2_70, %c2_71, %c0_72, %c0_73] : memref<3x3x16x32xf32, #tpu.memory_space<vmem>>, vector<1x1x16x32xf32>
    %236 = vector.shape_cast %235 : vector<1x1x16x32xf32> to vector<16x32xf32>
    %cst_74 = arith.constant dense<0.000000e+00> : vector<8x32xf32>
    %237 = tpu.matmul %234, %236, %cst_74 {dimension_numbers = #tpu.dot_dimension_numbers<[1], [0], [0], [1], [0, 0, 1, 1], [], []>} : vector<8x16xf32>, vector<16x32xf32>, vector<8x32xf32> -> vector<8x32xf32>
    %238 = arith.addf %212, %237 : vector<8x32xf32>
    %c0_75 = arith.constant 0 : index
    %c0_76 = arith.constant 0 : index
    %239 = vector.load %arg5[%c0_75, %c0_76] : memref<1x32xf32, #tpu.memory_space<vmem>>, vector<1x32xf32>
    %240 = vector.broadcast %239 : vector<1x32xf32> to vector<8x32xf32>
    %241 = arith.addf %238, %240 : vector<8x32xf32>
    %cst_77 = arith.constant 0.000000e+00 : f32
    %242 = vector.broadcast %cst_77 : f32 to vector<8x32xf32>
    %243 = arith.maximumf %241, %242 : vector<8x32xf32>
    %c0_78 = arith.constant 0 : index
    %c0_79 = arith.constant 0 : index
    %244 = vector.load %arg6[%c0_78, %c0_79] : memref<32x1xf32, #tpu.memory_space<vmem>>, vector<32x1xf32>
    %cst_80 = arith.constant dense<0.000000e+00> : vector<8x1xf32>
    %245 = tpu.matmul %243, %244, %cst_80 {dimension_numbers = #tpu.dot_dimension_numbers<[1], [0], [0], [1], [0, 0, 1, 1], [], []>} : vector<8x32xf32>, vector<32x1xf32>, vector<8x1xf32> -> vector<8x1xf32>
    %c0_81 = arith.constant 0 : index
    %c0_82 = arith.constant 0 : index
    %246 = vector.load %arg7[%c0_81, %c0_82] : memref<1x1xf32, #tpu.memory_space<vmem>>, vector<1x1xf32>
    %247 = vector.broadcast %246 : vector<1x1xf32> to vector<8x1xf32>
    %248 = arith.addf %245, %247 : vector<8x1xf32>
    %249 = arith.negf %248 : vector<8x1xf32>
    %250 = math.exp %249 : vector<8x1xf32>
    %cst_83 = arith.constant 1.000000e+00 : f32
    %251 = vector.broadcast %cst_83 : f32 to vector<8x1xf32>
    %252 = arith.addf %251, %250 : vector<8x1xf32>
    %253 = arith.divf %251, %252 : vector<8x1xf32>
    %c0_84 = arith.constant 0 : index
    %c0_85 = arith.constant 0 : index
    %254 = vector.load %arg8[%c0_84, %c0_85] : memref<8x1xf32, #tpu.memory_space<vmem>>, vector<8x1xf32>
    tpu.vector_store %arg8[%c0_84, %c0_85], %253 {strides = array<i32>} : memref<8x1xf32, #tpu.memory_space<vmem>>, vector<8x1xf32>,
    return
  }
  func.func @transform_0(%arg0: i32) -> (i32, i32, i32) {
    %c0_i32 = arith.constant 0 : i32
    %c0_i32_0 = arith.constant 0 : i32
    %c0_i32_1 = arith.constant 0 : i32
    return %c0_i32, %arg0, %c0_i32_0 : i32, i32, i32
  }
  func.func @transform_1(%arg0: i32) -> (i32, i32) {
    %c0_i32 = arith.constant 0 : i32
    %c0_i32_0 = arith.constant 0 : i32
    %c0_i32_1 = arith.constant 0 : i32
    return %c0_i32, %c0_i32_0 : i32, i32
  }
  func.func @transform_2(%arg0: i32) -> (i32, i32) {
    %c0_i32 = arith.constant 0 : i32
    %c0_i32_0 = arith.constant 0 : i32
    %c0_i32_1 = arith.constant 0 : i32
    return %c0_i32, %c0_i32_0 : i32, i32
  }
  func.func @transform_3(%arg0: i32) -> (i32, i32, i32, i32) {
    %c0_i32 = arith.constant 0 : i32
    %c0_i32_0 = arith.constant 0 : i32
    %c0_i32_1 = arith.constant 0 : i32
    %c0_i32_2 = arith.constant 0 : i32
    %c0_i32_3 = arith.constant 0 : i32
    return %c0_i32, %c0_i32_0, %c0_i32_1, %c0_i32_2 : i32, i32, i32, i32
  }
  func.func @transform_4(%arg0: i32) -> (i32, i32) {
    %c0_i32 = arith.constant 0 : i32
    %c0_i32_0 = arith.constant 0 : i32
    %c0_i32_1 = arith.constant 0 : i32
    return %c0_i32, %c0_i32_0 : i32, i32
  }
  func.func @transform_5(%arg0: i32) -> (i32, i32) {
    %c0_i32 = arith.constant 0 : i32
    %c0_i32_0 = arith.constant 0 : i32
    %c0_i32_1 = arith.constant 0 : i32
    return %c0_i32, %c0_i32_0 : i32, i32
  }
  func.func @transform_6(%arg0: i32) -> (i32, i32) {
    %c0_i32 = arith.constant 0 : i32
    %c0_i32_0 = arith.constant 0 : i32
    %c0_i32_1 = arith.constant 0 : i32
    return %c0_i32, %c0_i32_0 : i32, i32
  }
  func.func @transform_7(%arg0: i32) -> (i32, i32) {
    %c0_i32 = arith.constant 0 : i32
    %c0_i32_0 = arith.constant 0 : i32
    return %arg0, %c0_i32 : i32, i32
  }
}

</mosaic_0001>

<llo_original>
// kernel: tpu_custom_call.1
$region0: #{tpu_custom_call.1}
  #allocation0 [shape = 'u32[]', space=smem, size = 0x4, offset = 0x4, fixed_abs, tag = 'smem constant byte address 0x4 - core index']
  #allocation1 [shape = 'u32[72,128]{1,0:T(1,128)}', space=vmem, size = 0x9000, scoped, tag = 'internal scratch']
  #allocation2 [shape = 'f32[1,1]{1,0:T(1,128)S(1)}', space=vmem, size = 0x200, scoped, tag = 'scoped memory for tpu_custom_call.1']
  %s0 = inlined_call_operand.vmem [shape: f32[64,8,48], index: 0, kind: input, shape index: {}]
  %s1 = inlined_call_operand.vmem [shape: f32[48,16], index: 1, kind: input, shape index: {}]
  %s2 = inlined_call_operand.vmem [shape: f32[1,16], index: 2, kind: input, shape index: {}]
  %s3 = inlined_call_operand.vmem [shape: f32[3,3,16,32], index: 3, kind: input, shape index: {}]
  %s4 = inlined_call_operand.vmem [shape: f32[1,32], index: 4, kind: input, shape index: {}]
  %s5 = inlined_call_operand.vmem [shape: f32[32,1], index: 5, kind: input, shape index: {}]
  %s6 = inlined_call_operand.<no memory space> [shape: f32[1,1], index: 6, kind: input, shape index: {}]
  %s7 = inlined_call_operand.vmem [shape: f32[8,1], index: 7, kind: output, shape index: {}]
  %s8 = sld [smem:[#allocation0]]
  $region38: #{tpu_custom_call.1} parent=0
    _
  %s10 = ssub.s32 1, %s8
  %s11 = scalar_select 0, %s10, %s8
  %v12 = vstv %s6
  %13 = vst [vmem:[#allocation2] sm:$0x1] %v12
  // Predicated region
  $region2: #{tpu_custom_call.1} parent=0 // pred_check
    _
  $region3: #{tpu_custom_call.1} parent=0 // pred_check_branch
    %15 = sbr.rel (0) target = $region5
  $region4: #{tpu_custom_call.1} parent=0 // pred_region
    _
  $region5: #{tpu_custom_call.1} parent=0 // pred_fallthru
    _
  // Predicated region
  $region6: #{tpu_custom_call.1} parent=0 // pred_check
    _
  $region7: #{tpu_custom_call.1} parent=0 // pred_check_branch
    %17 = sbr.rel (0) target = $region9
  $region8: #{tpu_custom_call.1} parent=0 // pred_region
    _
  $region9: #{tpu_custom_call.1} parent=0 // pred_fallthru
    _
  // Predicated region
  $region10: #{tpu_custom_call.1} parent=0 // pred_check
    _
  $region11: #{tpu_custom_call.1} parent=0 // pred_check_branch
    %19 = sbr.rel (0) target = $region13
  $region12: #{tpu_custom_call.1} parent=0 // pred_region
    _
  $region13: #{tpu_custom_call.1} parent=0 // pred_fallthru
    _
  // Predicated region
  $region14: #{tpu_custom_call.1} parent=0 // pred_check
    _
  $region15: #{tpu_custom_call.1} parent=0 // pred_check_branch
    %21 = sbr.rel (0) target = $region17
  $region16: #{tpu_custom_call.1} parent=0 // pred_region
    _
  $region17: #{tpu_custom_call.1} parent=0 // pred_fallthru
    _
  // Predicated region
  $region18: #{tpu_custom_call.1} parent=0 // pred_check
    _
  $region19: #{tpu_custom_call.1} parent=0 // pred_check_branch
    %23 = sbr.rel (0) target = $region21
  $region20: #{tpu_custom_call.1} parent=0 // pred_region
    _
  $region21: #{tpu_custom_call.1} parent=0 // pred_fallthru
    _
  // Predicated region
  $region22: #{tpu_custom_call.1} parent=0 // pred_check
    _
  $region23: #{tpu_custom_call.1} parent=0 // pred_check_branch
    %25 = sbr.rel (0) target = $region25
  $region24: #{tpu_custom_call.1} parent=0 // pred_region
    _
  $region25: #{tpu_custom_call.1} parent=0 // pred_fallthru
    _
  // Predicated region
  $region26: #{tpu_custom_call.1} parent=0 // pred_check
    _
  $region27: #{tpu_custom_call.1} parent=0 // pred_check_branch
    %27 = sbr.rel (0) target = $region29
  $region28: #{tpu_custom_call.1} parent=0 // pred_region
    _
  $region29: #{tpu_custom_call.1} parent=0 // pred_fallthru
    _
  %v28 = vld [vmem:[%s0] sm:$0xff]
  %v29 = vld [vmem:[%s0 + $0x8] sm:$0xff]
  %v30 = vld [vmem:[%s0 + $0x10] sm:$0xff]
  %v31 = vld [vmem:[%s0 + $0x18] sm:$0xff]
  %v32 = vld [vmem:[%s0 + $0x20] sm:$0xff]
  %v33 = vld [vmem:[%s0 + $0x28] sm:$0xff]
  %v34 = vld [vmem:[%s0 + $0x30] sm:$0xff]
  %v35 = vld [vmem:[%s0 + $0x38] sm:$0xff]
  %v36 = vld [vmem:[%s0 + $0x40] sm:$0xff]
  %v37 = vld [vmem:[%s0 + $0x48] sm:$0xff]
  %v38 = vld [vmem:[%s0 + $0x50] sm:$0xff]
  %v39 = vld [vmem:[%s0 + $0x58] sm:$0xff]
  %v40 = vld [vmem:[%s0 + $0x60] sm:$0xff]
  %v41 = vld [vmem:[%s0 + $0x68] sm:$0xff]
  %v42 = vld [vmem:[%s0 + $0x70] sm:$0xff]
  %v43 = vld [vmem:[%s0 + $0x78] sm:$0xff]
  %v44 = vld [vmem:[%s0 + $0x80] sm:$0xff]
  %v45 = vld [vmem:[%s0 + $0x88] sm:$0xff]
  %v46 = vld [vmem:[%s0 + $0x90] sm:$0xff]
  %v47 = vld [vmem:[%s0 + $0x98] sm:$0xff]
  %v48 = vld [vmem:[%s0 + $0xa0] sm:$0xff]
  %v49 = vld [vmem:[%s0 + $0xa8] sm:$0xff]
  %v50 = vld [vmem:[%s0 + $0xb0] sm:$0xff]
  %v51 = vld [vmem:[%s0 + $0xb8] sm:$0xff]
  %v52 = vld [vmem:[%s0 + $0xc0] sm:$0xff]
  %v53 = vld [vmem:[%s0 + $0xc8] sm:$0xff]
  %v54 = vld [vmem:[%s0 + $0xd0] sm:$0xff]
  %v55 = vld [vmem:[%s0 + $0xd8] sm:$0xff]
  %v56 = vld [vmem:[%s0 + $0xe0] sm:$0xff]
  %v57 = vld [vmem:[%s0 + $0xe8] sm:$0xff]
  %v58 = vld [vmem:[%s0 + $0xf0] sm:$0xff]
  %v59 = vld [vmem:[%s0 + $0xf8] sm:$0xff]
  %v60 = vld [vmem:[%s0 + $0x100] sm:$0xff]
  %v61 = vld [vmem:[%s0 + $0x108] sm:$0xff]
  %v62 = vld [vmem:[%s0 + $0x110] sm:$0xff]
  %v63 = vld [vmem:[%s0 + $0x118] sm:$0xff]
  %v64 = vld [vmem:[%s0 + $0x120] sm:$0xff]
  %v65 = vld [vmem:[%s0 + $0x128] sm:$0xff]
  %v66 = vld [vmem:[%s0 + $0x130] sm:$0xff]
  %v67 = vld [vmem:[%s0 + $0x138] sm:$0xff]
  %v68 = vld [vmem:[%s0 + $0x140] sm:$0xff]
  %v69 = vld [vmem:[%s0 + $0x148] sm:$0xff]
  %v70 = vld [vmem:[%s0 + $0x150] sm:$0xff]
  %v71 = vld [vmem:[%s0 + $0x158] sm:$0xff]
  %v72 = vld [vmem:[%s0 + $0x160] sm:$0xff]
  %v73 = vld [vmem:[%s0 + $0x168] sm:$0xff]
  %v74 = vld [vmem:[%s0 + $0x170] sm:$0xff]
  %v75 = vld [vmem:[%s0 + $0x178] sm:$0xff]
  %v76 = vld [vmem:[%s0 + $0x180] sm:$0xff]
  %v77 = vld [vmem:[%s0 + $0x188] sm:$0xff]
  %v78 = vld [vmem:[%s0 + $0x190] sm:$0xff]
  %v79 = vld [vmem:[%s0 + $0x198] sm:$0xff]
  %v80 = vld [vmem:[%s0 + $0x1a0] sm:$0xff]
  %v81 = vld [vmem:[%s0 + $0x1a8] sm:$0xff]
  %v82 = vld [vmem:[%s0 + $0x1b0] sm:$0xff]
  %v83 = vld [vmem:[%s0 + $0x1b8] sm:$0xff]
  %v84 = vld [vmem:[%s0 + $0x1c0] sm:$0xff]
  %v85 = vld [vmem:[%s0 + $0x1c8] sm:$0xff]
  %v86 = vld [vmem:[%s0 + $0x1d0] sm:$0xff]
  %v87 = vld [vmem:[%s0 + $0x1d8] sm:$0xff]
  %v88 = vld [vmem:[%s0 + $0x1e0] sm:$0xff]
  %v89 = vld [vmem:[%s0 + $0x1e8] sm:$0xff]
  %v90 = vld [vmem:[%s0 + $0x1f0] sm:$0xff]
  %v91 = vld [vmem:[%s0 + $0x1f8] sm:$0xff]
  %v92 = vld [vmem:[%s1] sm:$0xff]
  %v93 = vld [vmem:[%s1 + $0x8] sm:$0xff]
  %v94 = vld [vmem:[%s1 + $0x10] sm:$0xff]
  %v95 = vld [vmem:[%s1 + $0x18] sm:$0xff]
  %v96 = vld [vmem:[%s1 + $0x20] sm:$0xff]
  %v97 = vld [vmem:[%s1 + $0x28] sm:$0xff]
  %vm98 = vcmask 392192
  %v100 = vsel %vm98, %v28, 0
  %v103 = vsel %vm98, %v29, 0
  %v106 = vsel %vm98, %v30, 0
  %v109 = vsel %vm98, %v31, 0
  %v112 = vsel %vm98, %v32, 0
  %v115 = vsel %vm98, %v33, 0
  %v118 = vsel %vm98, %v34, 0
  %v121 = vsel %vm98, %v35, 0
  %v124 = vsel %vm98, %v36, 0
  %v127 = vsel %vm98, %v37, 0
  %v130 = vsel %vm98, %v38, 0
  %v133 = vsel %vm98, %v39, 0
  %v136 = vsel %vm98, %v40, 0
  %v139 = vsel %vm98, %v41, 0
  %v142 = vsel %vm98, %v42, 0
  %v145 = vsel %vm98, %v43, 0
  %v148 = vsel %vm98, %v44, 0
  %v151 = vsel %vm98, %v45, 0
  %v154 = vsel %vm98, %v46, 0
  %v157 = vsel %vm98, %v47, 0
  %v160 = vsel %vm98, %v48, 0
  %v163 = vsel %vm98, %v49, 0
  %v166 = vsel %vm98, %v50, 0
  %v169 = vsel %vm98, %v51, 0
  %v172 = vsel %vm98, %v52, 0
  %v175 = vsel %vm98, %v53, 0
  %v178 = vsel %vm98, %v54, 0
  %v181 = vsel %vm98, %v55, 0
  %v184 = vsel %vm98, %v56, 0
  %v187 = vsel %vm98, %v57, 0
  %v190 = vsel %vm98, %v58, 0
  %v193 = vsel %vm98, %v59, 0
  %v196 = vsel %vm98, %v60, 0
  %v199 = vsel %vm98, %v61, 0
  %v202 = vsel %vm98, %v62, 0
  %v205 = vsel %vm98, %v63, 0
  %v208 = vsel %vm98, %v64, 0
  %v211 = vsel %vm98, %v65, 0
  %v214 = vsel %vm98, %v66, 0
  %v217 = vsel %vm98, %v67, 0
  %v220 = vsel %vm98, %v68, 0
  %v223 = vsel %vm98, %v69, 0
  %v226 = vsel %vm98, %v70, 0
  %v229 = vsel %vm98, %v71, 0
  %v232 = vsel %vm98, %v72, 0
  %v235 = vsel %vm98, %v73, 0
  %v238 = vsel %vm98, %v74, 0
  %v241 = vsel %vm98, %v75, 0
  %v244 = vsel %vm98, %v76, 0
  %v247 = vsel %vm98, %v77, 0
  %v250 = vsel %vm98, %v78, 0
  %v253 = vsel %vm98, %v79, 0
  %v256 = vsel %vm98, %v80, 0
  %v259 = vsel %vm98, %v81, 0
  %v262 = vsel %vm98, %v82, 0
  %v265 = vsel %vm98, %v83, 0
  %v268 = vsel %vm98, %v84, 0
  %v271 = vsel %vm98, %v85, 0
  %v274 = vsel %vm98, %v86, 0
  %v277 = vsel %vm98, %v87, 0
  %v280 = vsel %vm98, %v88, 0
  %v283 = vsel %vm98, %v89, 0
  %v286 = vsel %vm98, %v90, 0
  %v289 = vsel %vm98, %v91, 0
  %291 = vmatpush.msra.mxu0 0.0
  %292 = vmatpush.msra.mxu0 0.0
  %293 = vmatpush.msra.mxu0 0.0
  %294 = vmatpush.msra.mxu0 0.0
  %295 = vmatpush.msra.mxu0 0.0
  %296 = vmatpush.msra.mxu0 0.0
  %297 = vmatpush.msra.mxu0 0.0
  %298 = vmatpush.msra.mxu0 0.0
  %299 = vmatpush.msra.mxu0 0.0
  %300 = vmatpush.msra.mxu0 0.0
  %301 = vmatpush.msra.mxu0 %v97
  %302 = vmatpush.msra.mxu0 %v96
  %303 = vmatpush.msra.mxu0 %v95
  %304 = vmatpush.msra.mxu0 %v94
  %305 = vmatpush.msra.mxu0 %v93
  %306 = vmatpush.msra.mxu0 %v92
  %307 = vmatmul.f32.gmra.mxu0 %v100
  %v308 = vpop.f32.mrf.mxu0
  %v309 = vadd.f32 0.0, %v308
  %310 = vmatmul.f32.gmra.mxu0 %v103
  %v311 = vpop.f32.mrf.mxu0
  %v312 = vadd.f32 0.0, %v311
  %313 = vmatmul.f32.gmra.mxu0 %v106
  %v314 = vpop.f32.mrf.mxu0
  %v315 = vadd.f32 0.0, %v314
  %316 = vmatmul.f32.gmra.mxu0 %v109
  %v317 = vpop.f32.mrf.mxu0
  %v318 = vadd.f32 0.0, %v317
  %319 = vmatmul.f32.gmra.mxu0 %v112
  %v320 = vpop.f32.mrf.mxu0
  %v321 = vadd.f32 0.0, %v320
  %322 = vmatmul.f32.gmra.mxu0 %v115
  %v323 = vpop.f32.mrf.mxu0
  %v324 = vadd.f32 0.0, %v323
  %325 = vmatmul.f32.gmra.mxu0 %v118
  %v326 = vpop.f32.mrf.mxu0
  %v327 = vadd.f32 0.0, %v326
  %328 = vmatmul.f32.gmra.mxu0 %v121
  %v329 = vpop.f32.mrf.mxu0
  %330 = vmatmul.f32.gmra.mxu0 %v124
  %v331 = vpop.f32.mrf.mxu0
  %v332 = vadd.f32 0.0, %v331
  %333 = vmatmul.f32.gmra.mxu0 %v127
  %v334 = vpop.f32.mrf.mxu0
  %v335 = vadd.f32 0.0, %v334
  %336 = vmatmul.f32.gmra.mxu0 %v130
  %v337 = vpop.f32.mrf.mxu0
  %v338 = vadd.f32 0.0, %v337
  %339 = vmatmul.f32.gmra.mxu0 %v133
  %v340 = vpop.f32.mrf.mxu0
  %v341 = vadd.f32 0.0, %v340
  %342 = vmatmul.f32.gmra.mxu0 %v136
  %v343 = vpop.f32.mrf.mxu0
  %v344 = vadd.f32 0.0, %v343
  %345 = vmatmul.f32.gmra.mxu0 %v139
  %v346 = vpop.f32.mrf.mxu0
  %v347 = vadd.f32 0.0, %v346
  %348 = vmatmul.f32.gmra.mxu0 %v142
  %v349 = vpop.f32.mrf.mxu0
  %v350 = vadd.f32 0.0, %v349
  %351 = vmatmul.f32.gmra.mxu0 %v145
  %v352 = vpop.f32.mrf.mxu0
  %353 = vmatmul.f32.gmra.mxu0 %v148
  %v354 = vpop.f32.mrf.mxu0
  %v355 = vadd.f32 0.0, %v354
  %356 = vmatmul.f32.gmra.mxu0 %v151
  %v357 = vpop.f32.mrf.mxu0
  %v358 = vadd.f32 0.0, %v357
  %359 = vmatmul.f32.gmra.mxu0 %v154
  %v360 = vpop.f32.mrf.mxu0
  %v361 = vadd.f32 0.0, %v360
  %362 = vmatmul.f32.gmra.mxu0 %v157
  %v363 = vpop.f32.mrf.mxu0
  %v364 = vadd.f32 0.0, %v363
  %365 = vmatmul.f32.gmra.mxu0 %v160
  %v366 = vpop.f32.mrf.mxu0
  %v367 = vadd.f32 0.0, %v366
  %368 = vmatmul.f32.gmra.mxu0 %v163
  %v369 = vpop.f32.mrf.mxu0
  %v370 = vadd.f32 0.0, %v369
  %371 = vmatmul.f32.gmra.mxu0 %v166
  %v372 = vpop.f32.mrf.mxu0
  %v373 = vadd.f32 0.0, %v372
  %374 = vmatmul.f32.gmra.mxu0 %v169
  %v375 = vpop.f32.mrf.mxu0
  %376 = vmatmul.f32.gmra.mxu0 %v172
  %v377 = vpop.f32.mrf.mxu0
  %v378 = vadd.f32 0.0, %v377
  %379 = vmatmul.f32.gmra.mxu0 %v175
  %v380 = vpop.f32.mrf.mxu0
  %v381 = vadd.f32 0.0, %v380
  %382 = vmatmul.f32.gmra.mxu0 %v178
  %v383 = vpop.f32.mrf.mxu0
  %v384 = vadd.f32 0.0, %v383
  %385 = vmatmul.f32.gmra.mxu0 %v181
  %v386 = vpop.f32.mrf.mxu0
  %v387 = vadd.f32 0.0, %v386
  %388 = vmatmul.f32.gmra.mxu0 %v184
  %v389 = vpop.f32.mrf.mxu0
  %v390 = vadd.f32 0.0, %v389
  %391 = vmatmul.f32.gmra.mxu0 %v187
  %v392 = vpop.f32.mrf.mxu0
  %v393 = vadd.f32 0.0, %v392
  %394 = vmatmul.f32.gmra.mxu0 %v190
  %v395 = vpop.f32.mrf.mxu0
  %v396 = vadd.f32 0.0, %v395
  %397 = vmatmul.f32.gmra.mxu0 %v193
  %v398 = vpop.f32.mrf.mxu0
  %399 = vmatmul.f32.gmra.mxu0 %v196
  %v400 = vpop.f32.mrf.mxu0
  %v401 = vadd.f32 0.0, %v400
  %402 = vmatmul.f32.gmra.mxu0 %v199
  %v403 = vpop.f32.mrf.mxu0
  %v404 = vadd.f32 0.0, %v403
  %405 = vmatmul.f32.gmra.mxu0 %v202
  %v406 = vpop.f32.mrf.mxu0
  %v407 = vadd.f32 0.0, %v406
  %408 = vmatmul.f32.gmra.mxu0 %v205
  %v409 = vpop.f32.mrf.mxu0
  %v410 = vadd.f32 0.0, %v409
  %411 = vmatmul.f32.gmra.mxu0 %v208
  %v412 = vpop.f32.mrf.mxu0
  %v413 = vadd.f32 0.0, %v412
  %414 = vmatmul.f32.gmra.mxu0 %v211
  %v415 = vpop.f32.mrf.mxu0
  %v416 = vadd.f32 0.0, %v415
  %417 = vmatmul.f32.gmra.mxu0 %v214
  %v418 = vpop.f32.mrf.mxu0
  %v419 = vadd.f32 0.0, %v418
  %420 = vmatmul.f32.gmra.mxu0 %v217
  %v421 = vpop.f32.mrf.mxu0
  %422 = vmatmul.f32.gmra.mxu0 %v220
  %v423 = vpop.f32.mrf.mxu0
  %v424 = vadd.f32 0.0, %v423
  %425 = vmatmul.f32.gmra.mxu0 %v223
  %v426 = vpop.f32.mrf.mxu0
  %v427 = vadd.f32 0.0, %v426
  %428 = vmatmul.f32.gmra.mxu0 %v226
  %v429 = vpop.f32.mrf.mxu0
  %v430 = vadd.f32 0.0, %v429
  %431 = vmatmul.f32.gmra.mxu0 %v229
  %v432 = vpop.f32.mrf.mxu0
  %v433 = vadd.f32 0.0, %v432
  %434 = vmatmul.f32.gmra.mxu0 %v232
  %v435 = vpop.f32.mrf.mxu0
  %v436 = vadd.f32 0.0, %v435
  %437 = vmatmul.f32.gmra.mxu0 %v235
  %v438 = vpop.f32.mrf.mxu0
  %v439 = vadd.f32 0.0, %v438
  %440 = vmatmul.f32.gmra.mxu0 %v238
  %v441 = vpop.f32.mrf.mxu0
  %v442 = vadd.f32 0.0, %v441
  %443 = vmatmul.f32.gmra.mxu0 %v241
  %v444 = vpop.f32.mrf.mxu0
  %445 = vmatmul.f32.gmra.mxu0 %v244
  %v446 = vpop.f32.mrf.mxu0
  %v447 = vadd.f32 0.0, %v446
  %448 = vmatmul.f32.gmra.mxu0 %v247
  %v449 = vpop.f32.mrf.mxu0
  %v450 = vadd.f32 0.0, %v449
  %451 = vmatmul.f32.gmra.mxu0 %v250
  %v452 = vpop.f32.mrf.mxu0
  %v453 = vadd.f32 0.0, %v452
  %454 = vmatmul.f32.gmra.mxu0 %v253
  %v455 = vpop.f32.mrf.mxu0
  %v456 = vadd.f32 0.0, %v455
  %457 = vmatmul.f32.gmra.mxu0 %v256
  %v458 = vpop.f32.mrf.mxu0
  %v459 = vadd.f32 0.0, %v458
  %460 = vmatmul.f32.gmra.mxu0 %v259
  %v461 = vpop.f32.mrf.mxu0
  %v462 = vadd.f32 0.0, %v461
  %463 = vmatmul.f32.gmra.mxu0 %v262
  %v464 = vpop.f32.mrf.mxu0
  %v465 = vadd.f32 0.0, %v464
  %466 = vmatmul.f32.gmra.mxu0 %v265
  %v467 = vpop.f32.mrf.mxu0
  %468 = vmatmul.f32.gmra.mxu0 %v268
  %v469 = vpop.f32.mrf.mxu0
  %470 = vmatmul.f32.gmra.mxu0 %v271
  %v471 = vpop.f32.mrf.mxu0
  %472 = vmatmul.f32.gmra.mxu0 %v274
  %v473 = vpop.f32.mrf.mxu0
  %474 = vmatmul.f32.gmra.mxu0 %v277
  %v475 = vpop.f32.mrf.mxu0
  %476 = vmatmul.f32.gmra.mxu0 %v280
  %v477 = vpop.f32.mrf.mxu0
  %478 = vmatmul.f32.gmra.mxu0 %v283
  %v479 = vpop.f32.mrf.mxu0
  %480 = vmatmul.f32.gmra.mxu0 %v286
  %v481 = vpop.f32.mrf.mxu0
  %482 = vmatmul.f32.gmra.mxu0 %v289
  %v483 = vpop.f32.mrf.mxu0
  %484 = vdwg.mxu0
  %v485 = vmax.f32 %v309, %v312
  %v486 = vmax.f32 %v485, %v315
  %v487 = vmax.f32 %v486, %v332
  %v488 = vmax.f32 %v487, %v335
  %v489 = vmax.f32 %v488, %v338
  %v490 = vmax.f32 %v489, %v355
  %v491 = vmax.f32 %v490, %v358
  %v492 = vmax.f32 %v491, %v361
  %v493 = vld [vmem:[%s2] sm:$0x1]
  %v495 = vperm.slane %v493, 0
  %v497 = vadd.f32 %v492, %v495
  %v498 = vmax.f32 %v497, 0.0
  %v499 = vld [vmem:[%s3] sm:$0xff]
  %v500 = vld [vmem:[%s3 + $0x8] sm:$0xff]
  %v501 = vmax.f32 %v315, %v318
  %v502 = vmax.f32 %v501, %v321
  %v503 = vmax.f32 %v502, %v338
  %v504 = vmax.f32 %v503, %v341
  %v505 = vmax.f32 %v504, %v344
  %v506 = vmax.f32 %v505, %v361
  %v507 = vmax.f32 %v506, %v364
  %v508 = vmax.f32 %v507, %v367
  %v509 = vadd.f32 %v508, %v495
  %v510 = vmax.f32 %v509, 0.0
  %s511 = scalar_lea.vmem %s3, 16
  %v512 = vld [vmem:[%s511] sm:$0xff]
  %v513 = vld [vmem:[%s511 + $0x8] sm:$0xff]
  %vm514 = vcmask 130048
  %v516 = vsel %vm514, %v510, 0
  %518 = vmatpush.msra.mxu0 0.0
  %519 = vmatpush.msra.mxu0 0.0
  %520 = vmatpush.msra.mxu0 0.0
  %521 = vmatpush.msra.mxu0 0.0
  %522 = vmatpush.msra.mxu0 0.0
  %523 = vmatpush.msra.mxu0 0.0
  %524 = vmatpush.msra.mxu0 0.0
  %525 = vmatpush.msra.mxu0 0.0
  %526 = vmatpush.msra.mxu0 0.0
  %527 = vmatpush.msra.mxu0 0.0
  %528 = vmatpush.msra.mxu0 0.0
  %529 = vmatpush.msra.mxu0 0.0
  %530 = vmatpush.msra.mxu0 0.0
  %531 = vmatpush.msra.mxu0 0.0
  %532 = vmatpush.msra.mxu0 %v513
  %533 = vmatpush.msra.mxu0 %v512
  %534 = vmatmul.f32.gmra.mxu0 %v516
  %v535 = vpop.f32.mrf.mxu0
  %v536 = vadd.f32 0.0, %v535
  %537 = vdwg.mxu0
  %v539 = vsel %vm514, %v498, 0
  %541 = vmatpush.msra.mxu0 0.0
  %542 = vmatpush.msra.mxu0 0.0
  %543 = vmatpush.msra.mxu0 0.0
  %544 = vmatpush.msra.mxu0 0.0
  %545 = vmatpush.msra.mxu0 0.0
  %546 = vmatpush.msra.mxu0 0.0
  %547 = vmatpush.msra.mxu0 0.0
  %548 = vmatpush.msra.mxu0 0.0
  %549 = vmatpush.msra.mxu0 0.0
  %550 = vmatpush.msra.mxu0 0.0
  %551 = vmatpush.msra.mxu0 0.0
  %552 = vmatpush.msra.mxu0 0.0
  %553 = vmatpush.msra.mxu0 0.0
  %554 = vmatpush.msra.mxu0 0.0
  %555 = vmatpush.msra.mxu0 %v500
  %556 = vmatpush.msra.mxu0 %v499
  %557 = vmatmul.f32.gmra.mxu0 %v539
  %v558 = vpop.f32.mrf.mxu0
  %v559 = vadd.f32 %v536, %v558
  %560 = vdwg.mxu0
  %v561 = vmax.f32 %v321, %v324
  %v562 = vmax.f32 %v561, %v327
  %v563 = vmax.f32 %v562, %v344
  %v564 = vmax.f32 %v563, %v347
  %v565 = vmax.f32 %v564, %v350
  %v566 = vmax.f32 %v565, %v367
  %v567 = vmax.f32 %v566, %v370
  %v568 = vmax.f32 %v567, %v373
  %v569 = vadd.f32 %v568, %v495
  %v570 = vmax.f32 %v569, 0.0
  %s571 = scalar_lea.vmem %s3, 32
  %v572 = vld [vmem:[%s571] sm:$0xff]
  %v573 = vld [vmem:[%s571 + $0x8] sm:$0xff]
  %v575 = vsel %vm514, %v570, 0
  %577 = vmatpush.msra.mxu0 0.0
  %578 = vmatpush.msra.mxu0 0.0
  %579 = vmatpush.msra.mxu0 0.0
  %580 = vmatpush.msra.mxu0 0.0
  %581 = vmatpush.msra.mxu0 0.0
  %582 = vmatpush.msra.mxu0 0.0
  %583 = vmatpush.msra.mxu0 0.0
  %584 = vmatpush.msra.mxu0 0.0
  %585 = vmatpush.msra.mxu0 0.0
  %586 = vmatpush.msra.mxu0 0.0
  %587 = vmatpush.msra.mxu0 0.0
  %588 = vmatpush.msra.mxu0 0.0
  %589 = vmatpush.msra.mxu0 0.0
  %590 = vmatpush.msra.mxu0 0.0
  %591 = vmatpush.msra.mxu0 %v573
  %592 = vmatpush.msra.mxu0 %v572
  %593 = vmatmul.f32.gmra.mxu0 %v575
  %v594 = vpop.f32.mrf.mxu0
  %v595 = vadd.f32 0.0, %v594
  %596 = vdwg.mxu0
  %v597 = vadd.f32 %v559, %v595
  %v598 = vmax.f32 %v355, %v358
  %v599 = vmax.f32 %v598, %v361
  %v600 = vmax.f32 %v599, %v378
  %v601 = vmax.f32 %v600, %v381
  %v602 = vmax.f32 %v601, %v384
  %v603 = vmax.f32 %v602, %v401
  %v604 = vmax.f32 %v603, %v404
  %v605 = vmax.f32 %v604, %v407
  %v606 = vadd.f32 %v605, %v495
  %v607 = vmax.f32 %v606, 0.0
  %s608 = scalar_lea.vmem %s3, 48
  %v609 = vld [vmem:[%s608] sm:$0xff]
  %v610 = vld [vmem:[%s608 + $0x8] sm:$0xff]
  %v612 = vsel %vm514, %v607, 0
  %614 = vmatpush.msra.mxu0 0.0
  %615 = vmatpush.msra.mxu0 0.0
  %616 = vmatpush.msra.mxu0 0.0
  %617 = vmatpush.msra.mxu0 0.0
  %618 = vmatpush.msra.mxu0 0.0
  %619 = vmatpush.msra.mxu0 0.0
  %620 = vmatpush.msra.mxu0 0.0
  %621 = vmatpush.msra.mxu0 0.0
  %622 = vmatpush.msra.mxu0 0.0
  %623 = vmatpush.msra.mxu0 0.0
  %624 = vmatpush.msra.mxu0 0.0
  %625 = vmatpush.msra.mxu0 0.0
  %626 = vmatpush.msra.mxu0 0.0
  %627 = vmatpush.msra.mxu0 0.0
  %628 = vmatpush.msra.mxu0 %v610
  %629 = vmatpush.msra.mxu0 %v609
  %630 = vmatmul.f32.gmra.mxu0 %v612
  %v631 = vpop.f32.mrf.mxu0
  %v632 = vadd.f32 0.0, %v631
  %633 = vdwg.mxu0
  %v634 = vadd.f32 %v597, %v632
  %v635 = vmax.f32 %v361, %v364
  %v636 = vmax.f32 %v635, %v367
  %v637 = vmax.f32 %v636, %v384
  %v638 = vmax.f32 %v637, %v387
  %v639 = vmax.f32 %v638, %v390
  %v640 = vmax.f32 %v639, %v407
  %v641 = vmax.f32 %v640, %v410
  %v642 = vmax.f32 %v641, %v413
  %v643 = vadd.f32 %v642, %v495
  %v644 = vmax.f32 %v643, 0.0
  %s645 = scalar_lea.vmem %s3, 64
  %v646 = vld [vmem:[%s645] sm:$0xff]
  %v647 = vld [vmem:[%s645 + $0x8] sm:$0xff]
  %v649 = vsel %vm514, %v644, 0
  %651 = vmatpush.msra.mxu0 0.0
  %652 = vmatpush.msra.mxu0 0.0
  %653 = vmatpush.msra.mxu0 0.0
  %654 = vmatpush.msra.mxu0 0.0
  %655 = vmatpush.msra.mxu0 0.0
  %656 = vmatpush.msra.mxu0 0.0
  %657 = vmatpush.msra.mxu0 0.0
  %658 = vmatpush.msra.mxu0 0.0
  %659 = vmatpush.msra.mxu0 0.0
  %660 = vmatpush.msra.mxu0 0.0
  %661 = vmatpush.msra.mxu0 0.0
  %662 = vmatpush.msra.mxu0 0.0
  %663 = vmatpush.msra.mxu0 0.0
  %664 = vmatpush.msra.mxu0 0.0
  %665 = vmatpush.msra.mxu0 %v647
  %666 = vmatpush.msra.mxu0 %v646
  %667 = vmatmul.f32.gmra.mxu0 %v649
  %v668 = vpop.f32.mrf.mxu0
  %v669 = vadd.f32 0.0, %v668
  %670 = vdwg.mxu0
  %v671 = vadd.f32 %v634, %v669
  %v672 = vmax.f32 %v367, %v370
  %v673 = vmax.f32 %v672, %v373
  %v674 = vmax.f32 %v673, %v390
  %v675 = vmax.f32 %v674, %v393
  %v676 = vmax.f32 %v675, %v396
  %v677 = vmax.f32 %v676, %v413
  %v678 = vmax.f32 %v677, %v416
  %v679 = vmax.f32 %v678, %v419
  %v680 = vadd.f32 %v679, %v495
  %v681 = vmax.f32 %v680, 0.0
  %s682 = scalar_lea.vmem %s3, 80
  %v683 = vld [vmem:[%s682] sm:$0xff]
  %v684 = vld [vmem:[%s682 + $0x8] sm:$0xff]
  %v686 = vsel %vm514, %v681, 0
  %688 = vmatpush.msra.mxu0 0.0
  %689 = vmatpush.msra.mxu0 0.0
  %690 = vmatpush.msra.mxu0 0.0
  %691 = vmatpush.msra.mxu0 0.0
  %692 = vmatpush.msra.mxu0 0.0
  %693 = vmatpush.msra.mxu0 0.0
  %694 = vmatpush.msra.mxu0 0.0
  %695 = vmatpush.msra.mxu0 0.0
  %696 = vmatpush.msra.mxu0 0.0
  %697 = vmatpush.msra.mxu0 0.0
  %698 = vmatpush.msra.mxu0 0.0
  %699 = vmatpush.msra.mxu0 0.0
  %700 = vmatpush.msra.mxu0 0.0
  %701 = vmatpush.msra.mxu0 0.0
  %702 = vmatpush.msra.mxu0 %v684
  %703 = vmatpush.msra.mxu0 %v683
  %704 = vmatmul.f32.gmra.mxu0 %v686
  %v705 = vpop.f32.mrf.mxu0
  %v706 = vadd.f32 0.0, %v705
  %707 = vdwg.mxu0
  %v708 = vadd.f32 %v671, %v706
  %v709 = vmax.f32 %v401, %v404
  %v710 = vmax.f32 %v709, %v407
  %v711 = vmax.f32 %v710, %v424
  %v712 = vmax.f32 %v711, %v427
  %v713 = vmax.f32 %v712, %v430
  %v714 = vmax.f32 %v713, %v447
  %v715 = vmax.f32 %v714, %v450
  %v716 = vmax.f32 %v715, %v453
  %v717 = vadd.f32 %v716, %v495
  %v718 = vmax.f32 %v717, 0.0
  %s719 = scalar_lea.vmem %s3, 96
  %v720 = vld [vmem:[%s719] sm:$0xff]
  %v721 = vld [vmem:[%s719 + $0x8] sm:$0xff]
  %v723 = vsel %vm514, %v718, 0
  %725 = vmatpush.msra.mxu0 0.0
  %726 = vmatpush.msra.mxu0 0.0
  %727 = vmatpush.msra.mxu0 0.0
  %728 = vmatpush.msra.mxu0 0.0
  %729 = vmatpush.msra.mxu0 0.0
  %730 = vmatpush.msra.mxu0 0.0
  %731 = vmatpush.msra.mxu0 0.0
  %732 = vmatpush.msra.mxu0 0.0
  %733 = vmatpush.msra.mxu0 0.0
  %734 = vmatpush.msra.mxu0 0.0
  %735 = vmatpush.msra.mxu0 0.0
  %736 = vmatpush.msra.mxu0 0.0
  %737 = vmatpush.msra.mxu0 0.0
  %738 = vmatpush.msra.mxu0 0.0
  %739 = vmatpush.msra.mxu0 %v721
  %740 = vmatpush.msra.mxu0 %v720
  %741 = vmatmul.f32.gmra.mxu0 %v723
  %v742 = vpop.f32.mrf.mxu0
  %v743 = vadd.f32 0.0, %v742
  %744 = vdwg.mxu0
  %v745 = vadd.f32 %v708, %v743
  %v746 = vmax.f32 %v407, %v410
  %v747 = vmax.f32 %v746, %v413
  %v748 = vmax.f32 %v747, %v430
  %v749 = vmax.f32 %v748, %v433
  %v750 = vmax.f32 %v749, %v436
  %v751 = vmax.f32 %v750, %v453
  %v752 = vmax.f32 %v751, %v456
  %v753 = vmax.f32 %v752, %v459
  %v754 = vadd.f32 %v753, %v495
  %v755 = vmax.f32 %v754, 0.0
  %s756 = scalar_lea.vmem %s3, 112
  %v757 = vld [vmem:[%s756] sm:$0xff]
  %v758 = vld [vmem:[%s756 + $0x8] sm:$0xff]
  %v760 = vsel %vm514, %v755, 0
  %762 = vmatpush.msra.mxu0 0.0
  %763 = vmatpush.msra.mxu0 0.0
  %764 = vmatpush.msra.mxu0 0.0
  %765 = vmatpush.msra.mxu0 0.0
  %766 = vmatpush.msra.mxu0 0.0
  %767 = vmatpush.msra.mxu0 0.0
  %768 = vmatpush.msra.mxu0 0.0
  %769 = vmatpush.msra.mxu0 0.0
  %770 = vmatpush.msra.mxu0 0.0
  %771 = vmatpush.msra.mxu0 0.0
  %772 = vmatpush.msra.mxu0 0.0
  %773 = vmatpush.msra.mxu0 0.0
  %774 = vmatpush.msra.mxu0 0.0
  %775 = vmatpush.msra.mxu0 0.0
  %776 = vmatpush.msra.mxu0 %v758
  %777 = vmatpush.msra.mxu0 %v757
  %778 = vmatmul.f32.gmra.mxu0 %v760
  %v779 = vpop.f32.mrf.mxu0
  %v780 = vadd.f32 0.0, %v779
  %781 = vdwg.mxu0
  %v782 = vadd.f32 %v745, %v780
  %v783 = vmax.f32 %v413, %v416
  %v784 = vmax.f32 %v783, %v419
  %v785 = vmax.f32 %v784, %v436
  %v786 = vmax.f32 %v785, %v439
  %v787 = vmax.f32 %v786, %v442
  %v788 = vmax.f32 %v787, %v459
  %v789 = vmax.f32 %v788, %v462
  %v790 = vmax.f32 %v789, %v465
  %v791 = vadd.f32 %v790, %v495
  %v792 = vmax.f32 %v791, 0.0
  %s793 = scalar_lea.vmem %s3, 128
  %v794 = vld [vmem:[%s793] sm:$0xff]
  %v795 = vld [vmem:[%s793 + $0x8] sm:$0xff]
  %v797 = vsel %vm514, %v792, 0
  %799 = vmatpush.msra.mxu0 0.0
  %800 = vmatpush.msra.mxu0 0.0
  %801 = vmatpush.msra.mxu0 0.0
  %802 = vmatpush.msra.mxu0 0.0
  %803 = vmatpush.msra.mxu0 0.0
  %804 = vmatpush.msra.mxu0 0.0
  %805 = vmatpush.msra.mxu0 0.0
  %806 = vmatpush.msra.mxu0 0.0
  %807 = vmatpush.msra.mxu0 0.0
  %808 = vmatpush.msra.mxu0 0.0
  %809 = vmatpush.msra.mxu0 0.0
  %810 = vmatpush.msra.mxu0 0.0
  %811 = vmatpush.msra.mxu0 0.0
  %812 = vmatpush.msra.mxu0 0.0
  %813 = vmatpush.msra.mxu0 %v795
  %814 = vmatpush.msra.mxu0 %v794
  %815 = vmatmul.f32.gmra.mxu0 %v797
  %v816 = vpop.f32.mrf.mxu0
  %v817 = vadd.f32 0.0, %v816
  %818 = vdwg.mxu0
  %v819 = vadd.f32 %v782, %v817
  %v820 = vld [vmem:[%s4] sm:$0x1]
  %v822 = vperm.slane %v820, 0
  %v824 = vadd.f32 %v819, %v822
  %v825 = vmax.f32 %v824, 0.0
  %v826 = vld [vmem:[%s5] sm:$0xff]
  %v827 = vld [vmem:[%s5 + $0x8] sm:$0xff]
  %v828 = vld [vmem:[%s5 + $0x10] sm:$0xff]
  %v829 = vld [vmem:[%s5 + $0x18] sm:$0xff]
  %v830 = vld [vmem:[#allocation2] sm:$0x1]
  %v832 = vperm.slane %v830, 0
  %vm834 = vcmask 261120
  %v836 = vsel %vm834, %v825, 0
  %838 = vmatpush.msra.mxu0 0.0
  %839 = vmatpush.msra.mxu0 0.0
  %840 = vmatpush.msra.mxu0 0.0
  %841 = vmatpush.msra.mxu0 0.0
  %842 = vmatpush.msra.mxu0 0.0
  %843 = vmatpush.msra.mxu0 0.0
  %844 = vmatpush.msra.mxu0 0.0
  %845 = vmatpush.msra.mxu0 0.0
  %846 = vmatpush.msra.mxu0 0.0
  %847 = vmatpush.msra.mxu0 0.0
  %848 = vmatpush.msra.mxu0 0.0
  %849 = vmatpush.msra.mxu0 0.0
  %850 = vmatpush.msra.mxu0 %v829
  %851 = vmatpush.msra.mxu0 %v828
  %852 = vmatpush.msra.mxu0 %v827
  %853 = vmatpush.msra.mxu0 %v826
  %854 = vmatmul.f32.gmra.mxu0 %v836
  %v855 = vpop.f32.mrf.mxu0
  %v856 = vadd.f32 %v832, %v855
  %857 = vdwg.mxu0
  %v858 = vxor.u32 %v856, 2147483648
  %v859 = vmul.f32 %v858, 1.442695
  %v860 = vpow.pop %v859
  %v861 = vadd.f32 %v860, 1.0
  %v862 = vrcp.pop %v861
  %v863 = vmul.f32 %v861, %v862
  %v864 = vsub.f32 1.0, %v863
  %v865 = vmul.f32 %v862, %v864
  %v866 = vadd.f32 %v862, %v865
  %vm867 = vweird.f32 %v861
  %vm868 = vweird.f32 %v862
  %vm869 = vmor %vm867, %vm868
  %v870 = vsel %vm869, %v862, %v866
  %v871 = vand.u32 2147483647, %v861
  %vm872 = vcmp.eq.f32.partialorder %v871, 8.507059e+37
  %v873 = vand.u32 %v861, 2147483648
  %v874 = vor.u32 1.1754944e-38, %v873
  %v875 = vsel %vm872, %v874, %v870
  %v876 = vmul.f32 1.0, %v875
  %vm877 = vcmask 7168
  %878 = vst.msk [vmem:[%s7] sm:$0xff] %vm877, %v876
  // Predicated region
  $region30: #{tpu_custom_call.1} parent=0 // pred_check
    _
  $region31: #{tpu_custom_call.1} parent=0 // pred_check_branch
    %880 = sbr.rel (0) target = $region33
  $region32: #{tpu_custom_call.1} parent=0 // pred_region
    _
  $region33: #{tpu_custom_call.1} parent=0 // pred_fallthru
    _
  // Predicated region
  $region34: #{tpu_custom_call.1} parent=0 // pred_check
    _
  $region35: #{tpu_custom_call.1} parent=0 // pred_check_branch
    %882 = sbr.rel (0) target = $region37
  $region36: #{tpu_custom_call.1} parent=0 // pred_region
    _
  $region37: #{tpu_custom_call.1} parent=0 // pred_fallthru
    _

</llo_original>
